<compile_context>
chip_gen: v7x
topology: tpu7x:2x2x1
jax: 0.10.0
libtpu: 0.0.40
codegen_flags: <defaults>
</compile_context>

<pallas_src>
import functools

import jax
import jax.numpy as jnp
from jax.experimental import pallas as pl
from jax.experimental.pallas import tpu as pltpu


def _round_up(a: int, b: int) -> int:
    return ((a + b - 1) // b) * b


def gcn_node_kernel(x_ref, wt_ref, b_ref, o_ref, *, precision):
    # x_ref: (TM, N)   rows = flattened (batch, state), lanes = nodes
    # wt_ref: (N, N)   pre-transposed weight (Wt = W.T), resident
    # b_ref:  (1, N)   bias (always f32), resident
    # o_ref:  (TM, N)
    x = x_ref[...]
    h = jnp.dot(x, wt_ref[...], preferred_element_type=jnp.float32,
                precision=precision)                      # MXU, f32 accumulate
    o_ref[...] = (h + b_ref[...] + x.astype(jnp.float32)).astype(o_ref.dtype)


def _vmem_limit_bytes() -> int:
    """Generation-aware VMEM limit: half of physical, capped at 64 MiB."""
    try:
        info = pltpu.get_tpu_info()
        cap = getattr(info, "vmem_capacity_bytes", None)
        if cap:
            return int(min(cap // 2, 64 * 1024 * 1024))
    except Exception:
        pass
    return 32 * 1024 * 1024  # conservative fallback (safe on every generation)


def _pick_tm(m_rows: int, n: int, in_bytes: int, out_bytes: int,
             budget: int, tm_max: int = 4096) -> int:
    """Largest row tile keeping double-buffered x/out tiles + W + bias in budget."""
    w_bytes = 2 * n * n * in_bytes + 2 * n * 4            # double-buffered Wt + bias
    per_row = 2 * n * (in_bytes + out_bytes)               # double-buffered x + out rows
    tm = max(8, (budget - w_bytes) // max(per_row, 1))
    tm = min(tm, tm_max)
    # Keep >= 2 grid steps when the data permits (megacore sharding on v7x,
    # pipeline overlap elsewhere).
    tm = min(tm, max(8, _round_up(-(-m_rows // 2), 8)))
    tm = max(8, (tm // 8) * 8)                             # sublane multiple
    tm = min(tm, _round_up(m_rows, 8))                     # don't exceed the data
    return int(tm)


def gcn_node(x, w, bias, *, compute_dtype=None):
    """x: (B, S, N) float32, w: (N, N) Conv1d weight W[out, in], bias: (N,).

    compute_dtype=jnp.bfloat16 halves input HBM bytes (f32 accumulate kept).
    """
    B, S, N = x.shape
    M = B * S
    out_dtype = x.dtype
    cdt = jnp.dtype(compute_dtype) if compute_dtype is not None else jnp.dtype(x.dtype)
    in_bytes = cdt.itemsize
    out_bytes = jnp.dtype(out_dtype).itemsize

    vmem_limit = _vmem_limit_bytes()
    TM = _pick_tm(M, N, in_bytes, out_bytes, budget=vmem_limit - (2 << 20))
    Mp = _round_up(M, TM)
    grid = (Mp // TM,)

    # Layout plumbing — fused into the pallas_call operand reads via
    # allow_input_fusion, so no extra HBM round trip is materialized.
    x2 = x.reshape(M, N).astype(cdt)
    if Mp > M:                                             # conditional row pad only
        x2 = jnp.pad(x2, ((0, Mp - M), (0, 0)))
    wt = w.T.astype(cdt)                                   # pre-transposed weight
    b2 = bias.astype(jnp.float32).reshape(1, N)

    # Pin matmul precision: exact f32 parity unless the caller chose bf16.
    precision = (jax.lax.Precision.HIGHEST
                 if cdt == jnp.dtype(jnp.float32) else None)

    cost = pl.CostEstimate(
        flops=2 * Mp * N * N,
        transcendentals=0,
        bytes_accessed=(Mp * N * in_bytes           # x
                        + N * N * in_bytes          # Wt
                        + N * 4                     # bias
                        + Mp * N * out_bytes),      # output
    )

    out = pl.pallas_call(
        functools.partial(gcn_node_kernel, precision=precision),
        out_shape=jax.ShapeDtypeStruct((Mp, N), out_dtype),
        grid_spec=pltpu.PrefetchScalarGridSpec(
            num_scalar_prefetch=0,
            grid=grid,
            in_specs=[
                pl.BlockSpec((TM, N), lambda i: (i, 0)),   # x rows, tiled
                pl.BlockSpec((N, N), lambda i: (0, 0)),    # Wt, resident
                pl.BlockSpec((1, N), lambda i: (0, 0)),    # bias, resident
            ],
            out_specs=pl.BlockSpec((TM, N), lambda i: (i, 0)),
        ),
        compiler_params=pltpu.CompilerParams(
            dimension_semantics=("parallel",),
            vmem_limit_bytes=vmem_limit,
            allow_input_fusion=[True, True, True],
        ),
        cost_estimate=cost,
    )(x2, wt, b2)

    if Mp > M:
        out = out[:M]
    return out.reshape(B, S, N)


def gcn_node_ref(x, w, bias):
    # Pure-JAX reference mirroring the PyTorch forward (exact f32 matmul).
    return (jnp.einsum("bsm,nm->bsn", x, w, precision=jax.lax.Precision.HIGHEST)
            + bias[None, None, :] + x)


if __name__ == "__main__":
    key = jax.random.PRNGKey(0)

    def make_case(k, B, S, N, scale=0.1):
        kx, kw, kb = jax.random.split(k, 3)
        x = jax.random.normal(kx, (B, S, N), dtype=jnp.float32)
        # Synthetic Conv1d(num_node, num_node, kernel_size=1) params; PyTorch's
        # conv1 keeps its default bias=True (the ctor's `bias` arg is unused).
        w = jax.random.normal(kw, (N, N), dtype=jnp.float32) * scale
        b = jax.random.normal(kb, (N,), dtype=jnp.float32) * scale
        return x, w, b

    k1, k2, k3 = jax.random.split(key, 3)

    # Case 1: module's nominal small shape (B=2, num_state=16, num_node=8).
    x, w, b = make_case(k1, 2, 16, 8)
    out = jax.block_until_ready(gcn_node(x, w, b))
    ref = gcn_node_ref(x, w, b)
    assert out.shape == x.shape
    assert jnp.allclose(out, ref, atol=1e-5, rtol=1e-5), "case1 mismatch"

    # Case 2: multi-step row tiling + node axis that is not a multiple of 128
    # (exercises tiled grid and masked lane stores), exact-f32 path.
    x, w, b = make_case(k2, 3, 96, 192)
    out = jax.block_until_ready(gcn_node(x, w, b))
    ref = gcn_node_ref(x, w, b)
    assert jnp.allclose(out, ref, atol=1e-4, rtol=1e-4), "case2 mismatch"

    # Case 3: row-padding path (M % TM != 0) + bf16 compute (half input HBM bytes).
    x, w, b = make_case(k3, 2, 50, 64)
    out = jax.block_until_ready(gcn_node(x, w, b, compute_dtype=jnp.bfloat16))
    xb = x.astype(jnp.bfloat16).astype(jnp.float32)
    wb = w.astype(jnp.bfloat16).astype(jnp.float32)
    ref = (jnp.einsum("bsm,nm->bsn", xb, wb, precision=jax.lax.Precision.HIGHEST)
           + b[None, None, :] + xb)
    assert jnp.allclose(out, ref, atol=5e-3, rtol=5e-3), "case3 (bf16) mismatch"

    print("KERNEL_OK")
</pallas_src>

<mosaic_0001>
module attributes {stable_mosaic.version = 11 : i64} {
  func.func @gcn_node_kernel(%arg0: i32, %arg1: memref<16x8xf32, #tpu.memory_space<vmem>>, %arg2: memref<8x8xf32, #tpu.memory_space<vmem>>, %arg3: memref<1x8xf32, #tpu.memory_space<vmem>>, %arg4: memref<16x8xf32, #tpu.memory_space<vmem>>) attributes {dimension_semantics = [#tpu.dimension_semantics<parallel>], iteration_bounds = array<i64: 2>, scalar_prefetch = 0 : i64, scratch_operands = 0 : i64, tpu.core_type = #tpu.core_type<tc>, window_params = [{transform_indices = @transform_0, window_bounds = array<i64: 16, 8>}, {pipeline_mode = #tpu.pipeline_mode<synchronous>, transform_indices = @transform_1, window_bounds = array<i64: 8, 8>}, {pipeline_mode = #tpu.pipeline_mode<synchronous>, transform_indices = @transform_2, window_bounds = array<i64: 1, 8>}, {transform_indices = @transform_3, window_bounds = array<i64: 16, 8>}]} {
    %c0 = arith.constant 0 : index
    %c0_0 = arith.constant 0 : index
    %0 = vector.load %arg1[%c0, %c0_0] : memref<16x8xf32, #tpu.memory_space<vmem>>, vector<16x8xf32>
    %c0_1 = arith.constant 0 : index
    %c0_2 = arith.constant 0 : index
    %1 = vector.load %arg2[%c0_1, %c0_2] : memref<8x8xf32, #tpu.memory_space<vmem>>, vector<8x8xf32>
    %cst = arith.constant dense<0.000000e+00> : vector<16x8xf32>
    %2 = tpu.matmul %0, %1, %cst {dimension_numbers = #tpu.dot_dimension_numbers<[1], [0], [0], [1], [0, 0, 1, 1], [], []>, precision = #tpu.contract_precision<fp32>} : vector<16x8xf32>, vector<8x8xf32>, vector<16x8xf32> -> vector<16x8xf32>
    %c0_3 = arith.constant 0 : index
    %c0_4 = arith.constant 0 : index
    %3 = vector.load %arg3[%c0_3, %c0_4] : memref<1x8xf32, #tpu.memory_space<vmem>>, vector<1x8xf32>
    %4 = vector.broadcast %3 : vector<1x8xf32> to vector<16x8xf32>
    %5 = arith.addf %2, %4 : vector<16x8xf32>
    %6 = arith.addf %5, %0 : vector<16x8xf32>
    %c0_5 = arith.constant 0 : index
    %c0_6 = arith.constant 0 : index
    %7 = vector.load %arg4[%c0_5, %c0_6] : memref<16x8xf32, #tpu.memory_space<vmem>>, vector<16x8xf32>
    tpu.vector_store %arg4[%c0_5, %c0_6], %6 {strides = array<i32>} : memref<16x8xf32, #tpu.memory_space<vmem>>, vector<16x8xf32>,
    return
  }
  func.func @transform_0(%arg0: i32) -> (i32, i32) {
    %c0_i32 = arith.constant 0 : i32
    %c0_i32_0 = arith.constant 0 : i32
    return %arg0, %c0_i32 : i32, i32
  }
  func.func @transform_1(%arg0: i32) -> (i32, i32) {
    %c0_i32 = arith.constant 0 : i32
    %c0_i32_0 = arith.constant 0 : i32
    %c0_i32_1 = arith.constant 0 : i32
    return %c0_i32, %c0_i32_0 : i32, i32
  }
  func.func @transform_2(%arg0: i32) -> (i32, i32) {
    %c0_i32 = arith.constant 0 : i32
    %c0_i32_0 = arith.constant 0 : i32
    %c0_i32_1 = arith.constant 0 : i32
    return %c0_i32, %c0_i32_0 : i32, i32
  }
  func.func @transform_3(%arg0: i32) -> (i32, i32) {
    %c0_i32 = arith.constant 0 : i32
    %c0_i32_0 = arith.constant 0 : i32
    return %arg0, %c0_i32 : i32, i32
  }
}

</mosaic_0001>

<llo_original>
// kernel: tpu_custom_call.1
$region0: #{tpu_custom_call.1}
  #allocation0 [shape = 'u32[]', space=smem, size = 0x4, offset = 0x4, fixed_abs, tag = 'smem constant byte address 0x4 - core index']
  #allocation1 [shape = 'u32[144,128]{1,0:T(1,128)}', space=vmem, size = 0x12000, scoped, tag = 'internal scratch']
  %s0 = inlined_call_operand.vmem [shape: f32[32,8], index: 0, kind: input, shape index: {}]
  %s1 = inlined_call_operand.vmem [shape: f32[8,8], index: 1, kind: input, shape index: {}]
  %s2 = inlined_call_operand.vmem [shape: f32[1,8], index: 2, kind: input, shape index: {}]
  %s3 = inlined_call_operand.vmem [shape: f32[32,8], index: 3, kind: output, shape index: {}]
  %s4 = sld [smem:[#allocation0]]
  $region45: #{tpu_custom_call.1} parent=0
    _
  %s6 = ssub.s32 1, %s4
  %s7 = scalar_select 0, %s6, %s4
  loop: start=0, step=1, limit=4
  $region2: #{tpu_custom_call.1} parent=0 // loop_pre_header
    _
  $region3: #{tpu_custom_call.1} parent=0 // loop_header
    %s9 = sphi 0, %s13
    %p10 = scmp.ge.s32.totalorder %s9, 4
    %s19 = sphi 0, %s21
    %s22 = sphi 0, %s19
    %s23 = sphi 0, %s22
    %s39 = sphi 0, %s23
    %s43 = sphi 0, %s43
    %s45 = sphi 0, %s43
    %s46 = sphi 0, %s45
    %s60 = sphi 0, %s46
    %s64 = sphi 0, %s64
    %s66 = sphi 0, %s64
    %s67 = sphi 0, %s66
    %s81 = sphi 0, %s67
    %s87 = sphi 0, %s89
    %s90 = sphi 0, %s87
    %s91 = sphi 0, %s90
    %s107 = sphi 0, %s91
  $region4: #{tpu_custom_call.1} parent=0 // loop_header_branch
    %12 = sbr.rel (%p10) target = $region8
  $region5: #{tpu_custom_call.1} parent=0 // loop_body
    %s14 = ssub.s32 %s9, 1
    %s15 = ssub.s32 %s9, 2
    %s16 = sadd.s32 %s9, 1
    %s17 = ssub.s32 %s9, %s16
    %p18 = scmp.eq.s32.totalorder %s17, 0
    %s20 = sadd.s32 %s19, 1
    %s21 = scalar_select %p18, %s19, %s20
    %p24 = pneg %p18
    %p25 = scmp.eq.s32.totalorder %s9, 1
    %p26 = por %p24, %p25
    %p27 = scmp.ne.s32.totalorder %s19, %s22
    %p28 = scmp.eq.s32.totalorder %s9, 0
    %p29 = por %p27, %p28
    %p30 = scmp.ne.s32.totalorder %s19, %s22
    %p31 = scmp.eq.s32.totalorder %s14, 1
    %p32 = por %p30, %p31
    %p33 = scmp.ne.s32.totalorder %s22, %s23
    %p34 = scmp.eq.s32.totalorder %s14, 0
    %p35 = por %p33, %p34
    %p36 = scmp.ne.s32.totalorder %s22, %s23
    %p37 = scmp.eq.s32.totalorder %s15, 1
    %p38 = por %p36, %p37
    %p40 = scmp.ne.s32.totalorder %s23, %s39
    %p41 = scmp.eq.s32.totalorder %s15, 0
    %p42 = por %p40, %p41
    %s44 = sadd.s32 %s43, 1
    %p47 = scmp.eq.s32.totalorder %s9, 1
    %p48 = scmp.ne.s32.totalorder %s43, %s45
    %p49 = scmp.eq.s32.totalorder %s9, 0
    %p50 = por %p48, %p49
    %p51 = scmp.ne.s32.totalorder %s43, %s45
    %p52 = scmp.eq.s32.totalorder %s14, 1
    %p53 = por %p51, %p52
    %p54 = scmp.ne.s32.totalorder %s45, %s46
    %p55 = scmp.eq.s32.totalorder %s14, 0
    %p56 = por %p54, %p55
    %p57 = scmp.ne.s32.totalorder %s45, %s46
    %p58 = scmp.eq.s32.totalorder %s15, 1
    %p59 = por %p57, %p58
    %p61 = scmp.ne.s32.totalorder %s46, %s60
    %p62 = scmp.eq.s32.totalorder %s15, 0
    %p63 = por %p61, %p62
    %s65 = sadd.s32 %s64, 1
    %p68 = scmp.eq.s32.totalorder %s9, 1
    %p69 = scmp.ne.s32.totalorder %s64, %s66
    %p70 = scmp.eq.s32.totalorder %s9, 0
    %p71 = por %p69, %p70
    %p72 = scmp.ne.s32.totalorder %s64, %s66
    %p73 = scmp.eq.s32.totalorder %s14, 1
    %p74 = por %p72, %p73
    %p75 = scmp.ne.s32.totalorder %s66, %s67
    %p76 = scmp.eq.s32.totalorder %s14, 0
    %p77 = por %p75, %p76
    %p78 = scmp.ne.s32.totalorder %s66, %s67
    %p79 = scmp.eq.s32.totalorder %s15, 1
    %p80 = por %p78, %p79
    %p82 = scmp.ne.s32.totalorder %s67, %s81
    %p83 = scmp.eq.s32.totalorder %s15, 0
    %p84 = por %p82, %p83
    %s85 = ssub.s32 %s9, %s16
    %p86 = scmp.eq.s32.totalorder %s85, 0
    %s88 = sadd.s32 %s87, 1
    %s89 = scalar_select %p86, %s87, %s88
    %p92 = pneg %p86
    %p93 = scmp.eq.s32.totalorder %s9, 1
    %p94 = por %p92, %p93
    %p95 = scmp.ne.s32.totalorder %s87, %s90
    %p96 = scmp.eq.s32.totalorder %s9, 0
    %p97 = por %p95, %p96
    %p98 = scmp.ne.s32.totalorder %s87, %s90
    %p99 = scmp.eq.s32.totalorder %s14, 1
    %p100 = por %p98, %p99
    %p101 = scmp.ne.s32.totalorder %s90, %s91
    %p102 = scmp.eq.s32.totalorder %s14, 0
    %p103 = por %p101, %p102
    %p104 = scmp.ne.s32.totalorder %s90, %s91
    %p105 = scmp.eq.s32.totalorder %s15, 1
    %p106 = por %p104, %p105
    %p108 = scmp.ne.s32.totalorder %s91, %s107
    %p109 = scmp.eq.s32.totalorder %s15, 0
    %p110 = por %p108, %p109
    %p111 = scmp.le.s32.totalorder 1, %s9
    %p112 = scmp.lt.s32.totalorder %s9, 3
    %p113 = pnand %p111, %p112
    %p114 = pneg %p113
    // Predicated region
    $region9: #{tpu_custom_call.1} parent=5 // pred_check
      _
    $region10: #{tpu_custom_call.1} parent=5 // pred_check_branch
      %116 = sbr.rel (%p113) target = $region12
    $region11: #{tpu_custom_call.1} parent=5 // pred_region
      %s117 = ssub.s32 %s9, 1
      // Predicated region
      $region13: #{tpu_custom_call.1} parent=11 // pred_check
        %p118 = pneg %p56
      $region14: #{tpu_custom_call.1} parent=11 // pred_check_branch
        %120 = sbr.rel (%p118) target = $region16
      $region15: #{tpu_custom_call.1} parent=11 // pred_region
        _
      $region16: #{tpu_custom_call.1} parent=11 // pred_fallthru
        _
      // Predicated region
      $region17: #{tpu_custom_call.1} parent=11 // pred_check
        %p121 = pneg %p77
      $region18: #{tpu_custom_call.1} parent=11 // pred_check_branch
        %123 = sbr.rel (%p121) target = $region20
      $region19: #{tpu_custom_call.1} parent=11 // pred_region
        _
      $region20: #{tpu_custom_call.1} parent=11 // pred_fallthru
        _
    $region12: #{tpu_custom_call.1} parent=5 // pred_fallthru
      _
    %p124 = scmp.lt.s32.totalorder %s9, 2
    // Predicated region
    $region21: #{tpu_custom_call.1} parent=5 // pred_check
      %p125 = pneg %p124
    $region22: #{tpu_custom_call.1} parent=5 // pred_check_branch
      %127 = sbr.rel (%p125) target = $region24
    $region23: #{tpu_custom_call.1} parent=5 // pred_region
      // Predicated region
      $region25: #{tpu_custom_call.1} parent=23 // pred_check
        %p128 = pneg %p29
      $region26: #{tpu_custom_call.1} parent=23 // pred_check_branch
        %130 = sbr.rel (%p128) target = $region28
      $region27: #{tpu_custom_call.1} parent=23 // pred_region
        %s131 = smul.u32 2, %s9
        %p132 = scmp.lt.s32.totalorder %s131, 3
        %s133 = scalar_select %p132, %s131, 3
        %s134 = smul.addr %s133, 8
        %s135 = scalar_lea.vmem %s0, %s134
        %s136 = smul.u32 2, %s9
      $region28: #{tpu_custom_call.1} parent=23 // pred_fallthru
        _
    $region24: #{tpu_custom_call.1} parent=5 // pred_fallthru
      _
    %p137 = scmp.le.s32.totalorder 1, %s9
    %p138 = scmp.lt.s32.totalorder %s9, 3
    %p139 = pnand %p137, %p138
    %p140 = pneg %p139
    // Predicated region
    $region29: #{tpu_custom_call.1} parent=5 // pred_check
      _
    $region30: #{tpu_custom_call.1} parent=5 // pred_check_branch
      %142 = sbr.rel (%p139) target = $region32
    $region31: #{tpu_custom_call.1} parent=5 // pred_region
      %s143 = ssub.s32 %s9, 1
      %s144 = smul.u32 2, %s14
      %p145 = scmp.lt.s32.totalorder %s144, 3
      %s146 = scalar_select %p145, %s144, 3
      %s147 = smul.addr %s146, 8
      %s148 = scalar_lea.vmem %s0, %s147
      %p149 = pneg %p35
      %p150 = pneg %p32
      %p151 = pneg %p56
      %p152 = pneg %p53
      %p153 = pneg %p77
      %p154 = pneg %p74
      %p155 = pneg %p103
      %p156 = pneg %p100
      %s157 = smul.u32 2, %s14
      %p158 = scmp.lt.s32.totalorder %s157, 3
      %s159 = scalar_select %p158, %s157, 3
      %s160 = smul.addr %s159, 8
      %s161 = scalar_lea.vmem %s3, %s160
      %s162 = smul.u32 2, %s14
      %p163 = scmp.lt.s32.totalorder %s162, 3
      %s164 = scalar_select %p163, %s162, 3
      %s165 = smul.addr %s164, 8
      %s166 = scalar_lea.vmem %s0, %s165
      %s167 = smul.u32 2, %s14
      %s168 = smul.u32 2, %s14
      %p169 = scmp.lt.s32.totalorder %s168, 3
      %s170 = scalar_select %p169, %s168, 3
      %s171 = smul.addr %s170, 8
      %s172 = scalar_lea.vmem %s3, %s171
      %s173 = smul.u32 2, %s14
      %v174 = vld [vmem:[%s166] sm:$0xff]
      %v175 = vld [vmem:[%s166 + $0x8] sm:$0xff]
      %v176 = vld [vmem:[%s1] sm:$0xff]
      %v177 = vld [vmem:[%s2] sm:$0x1]
      %v179 = vlaneseq
      %v180 = vshrl.u32 %v179, 7
      %v181 = vsub.s32 0, %v180
      %v182 = vrot.slane %v177, %v181
      %vm184 = vcmask 64512
      %v186 = vsel %vm184, %v174, 0
      %v189 = vsel %vm184, %v175, 0
      %191 = vmatprep.subr.mxu0 0.0
      %v192 = vand.u32 %v176, 4294901760
      %193 = vmatpush1.msra.mxu0 %v192
      %194 = vmatprep.subr.mxu0 0.0
      %195 = vmatpush1.msra.mxu0 0.0
      %196 = vmatprep.subr.mxu0 0.0
      %197 = vmatpush1.msra.mxu0 0.0
      %198 = vmatprep.subr.mxu0 0.0
      %199 = vmatpush1.msra.mxu0 0.0
      %200 = vmatprep.subr.mxu0 0.0
      %201 = vmatpush1.msra.mxu0 0.0
      %202 = vmatprep.subr.mxu0 0.0
      %203 = vmatpush1.msra.mxu0 0.0
      %204 = vmatprep.subr.mxu0 0.0
      %205 = vmatpush1.msra.mxu0 0.0
      %206 = vmatprep.subr.mxu0 0.0
      %207 = vmatpush1.msra.mxu0 0.0
      %208 = vmatprep.subr.mxu0 0.0
      %209 = vmatpush1.msra.mxu0 0.0
      %210 = vmatprep.subr.mxu0 0.0
      %211 = vmatpush1.msra.mxu0 0.0
      %212 = vmatprep.subr.mxu0 0.0
      %213 = vmatpush1.msra.mxu0 0.0
      %214 = vmatprep.subr.mxu0 0.0
      %215 = vmatpush1.msra.mxu0 0.0
      %216 = vmatprep.subr.mxu0 0.0
      %217 = vmatpush1.msra.mxu0 0.0
      %218 = vmatprep.subr.mxu0 0.0
      %219 = vmatpush1.msra.mxu0 0.0
      %220 = vmatprep.subr.mxu0 0.0
      %221 = vmatpush1.msra.mxu0 0.0
      %222 = vmatprep.subr.mxu0 0.0
      %223 = vmatpush1.msra.mxu0 0.0
      %224 = vmatprep.subr.mxu0 0.0
      %225 = vmatpush1.msra.mxu0 0.0
      %226 = vmatprep.subr.mxu0 0.0
      %227 = vmatpush1.msra.mxu0 0.0
      %228 = vmatprep.subr.mxu0 0.0
      %229 = vmatpush1.msra.mxu0 0.0
      %230 = vmatprep.subr.mxu0 0.0
      %231 = vmatpush1.msra.mxu0 0.0
      %232 = vmatprep.subr.mxu0 0.0
      %233 = vmatpush1.msra.mxu0 0.0
      %234 = vmatprep.subr.mxu0 0.0
      %235 = vmatpush1.msra.mxu0 0.0
      %236 = vmatprep.subr.mxu0 0.0
      %237 = vmatpush1.msra.mxu0 0.0
      %238 = vmatprep.subr.mxu0 0.0
      %239 = vmatpush1.msra.mxu0 0.0
      %240 = vmatprep.subr.mxu0 0.0
      %241 = vmatpush1.msra.mxu0 0.0
      %242 = vmatprep.subr.mxu0 0.0
      %243 = vmatpush1.msra.mxu0 0.0
      %244 = vmatprep.subr.mxu0 0.0
      %245 = vmatpush1.msra.mxu0 0.0
      %246 = vmatprep.subr.mxu0 0.0
      %247 = vmatpush1.msra.mxu0 0.0
      %248 = vmatprep.subr.mxu0 0.0
      %249 = vmatpush1.msra.mxu0 0.0
      %250 = vmatprep.subr.mxu0 0.0
      %251 = vmatpush1.msra.mxu0 0.0
      %252 = vmatprep.subr.mxu0 0.0
      %253 = vmatpush1.msra.mxu0 0.0
      %254 = vmatprep.subr.mxu0 0.0
      %255 = vmatpush1.msra.mxu0 0.0
      %256 = vmatprep.mubr.f32.mxu0 0.0
      %v257 = vand.u32 %v186, 4294901760
      %v258 = vsub.f32 %v186, %v257
      %v259 = vand.u32 %v258, 4294901760
      %v260 = vsub.f32 %v258, %v259
      %v261 = vand.u32 %v260, 4294901760
      %262 = vmatmul.mubr.f32.gmra.mrb[0].mxu0 %v261
      %v263 = vpop.f32.mrb[0].mxu0
      %v264 = vadd.f32 %v182, %v263
      %v265 = vpop.f32.mrb[0].mxu0
      %266 = vmatprep.mubr.f32.mxu0 0.0
      %v267 = vand.u32 %v189, 4294901760
      %v268 = vsub.f32 %v189, %v267
      %v269 = vand.u32 %v268, 4294901760
      %v270 = vsub.f32 %v268, %v269
      %v271 = vand.u32 %v270, 4294901760
      %272 = vmatmul.mubr.f32.gmra.mrb[0].mxu0 %v271
      %v273 = vpop.f32.mrb[0].mxu0
      %v274 = vadd.f32 %v182, %v273
      %v275 = vpop.f32.mrb[0].mxu0
      %276 = vdwg.mxu0
      %277 = vmatprep.subr.mxu0 0.0
      %v278 = vand.u32 %v176, 4294901760
      %v279 = vsub.f32 %v176, %v278
      %v280 = vand.u32 %v279, 4294901760
      %v281 = vsub.f32 %v279, %v280
      %v282 = vand.u32 %v281, 4294901760
      %283 = vmatpush1.msra.mxu0 %v282
      %284 = vmatprep.subr.mxu0 0.0
      %285 = vmatpush1.msra.mxu0 0.0
      %286 = vmatprep.subr.mxu0 0.0
      %287 = vmatpush1.msra.mxu0 0.0
      %288 = vmatprep.subr.mxu0 0.0
      %289 = vmatpush1.msra.mxu0 0.0
      %290 = vmatprep.subr.mxu0 0.0
      %291 = vmatpush1.msra.mxu0 0.0
      %292 = vmatprep.subr.mxu0 0.0
      %293 = vmatpush1.msra.mxu0 0.0
      %294 = vmatprep.subr.mxu0 0.0
      %295 = vmatpush1.msra.mxu0 0.0
      %296 = vmatprep.subr.mxu0 0.0
      %297 = vmatpush1.msra.mxu0 0.0
      %298 = vmatprep.subr.mxu0 0.0
      %299 = vmatpush1.msra.mxu0 0.0
      %300 = vmatprep.subr.mxu0 0.0
      %301 = vmatpush1.msra.mxu0 0.0
      %302 = vmatprep.subr.mxu0 0.0
      %303 = vmatpush1.msra.mxu0 0.0
      %304 = vmatprep.subr.mxu0 0.0
      %305 = vmatpush1.msra.mxu0 0.0
      %306 = vmatprep.subr.mxu0 0.0
      %307 = vmatpush1.msra.mxu0 0.0
      %308 = vmatprep.subr.mxu0 0.0
      %309 = vmatpush1.msra.mxu0 0.0
      %310 = vmatprep.subr.mxu0 0.0
      %311 = vmatpush1.msra.mxu0 0.0
      %312 = vmatprep.subr.mxu0 0.0
      %313 = vmatpush1.msra.mxu0 0.0
      %314 = vmatprep.subr.mxu0 0.0
      %315 = vmatpush1.msra.mxu0 0.0
      %316 = vmatprep.subr.mxu0 0.0
      %317 = vmatpush1.msra.mxu0 0.0
      %318 = vmatprep.subr.mxu0 0.0
      %319 = vmatpush1.msra.mxu0 0.0
      %320 = vmatprep.subr.mxu0 0.0
      %321 = vmatpush1.msra.mxu0 0.0
      %322 = vmatprep.subr.mxu0 0.0
      %323 = vmatpush1.msra.mxu0 0.0
      %324 = vmatprep.subr.mxu0 0.0
      %325 = vmatpush1.msra.mxu0 0.0
      %326 = vmatprep.subr.mxu0 0.0
      %327 = vmatpush1.msra.mxu0 0.0
      %328 = vmatprep.subr.mxu0 0.0
      %329 = vmatpush1.msra.mxu0 0.0
      %330 = vmatprep.subr.mxu0 0.0
      %331 = vmatpush1.msra.mxu0 0.0
      %332 = vmatprep.subr.mxu0 0.0
      %333 = vmatpush1.msra.mxu0 0.0
      %334 = vmatprep.subr.mxu0 0.0
      %335 = vmatpush1.msra.mxu0 0.0
      %336 = vmatprep.subr.mxu0 0.0
      %337 = vmatpush1.msra.mxu0 0.0
      %338 = vmatprep.subr.mxu0 0.0
      %339 = vmatpush1.msra.mxu0 0.0
      %340 = vmatprep.subr.mxu0 0.0
      %341 = vmatpush1.msra.mxu0 0.0
      %342 = vmatprep.subr.mxu0 0.0
      %343 = vmatpush1.msra.mxu0 0.0
      %344 = vmatprep.subr.mxu0 0.0
      %345 = vmatpush1.msra.mxu0 0.0
      %346 = vmatprep.mubr.f32.mxu0 0.0
      %v347 = vand.u32 %v186, 4294901760
      %348 = vmatmul.mubr.f32.gmra.mrb[0].mxu0 %v347
      %v349 = vpop.f32.mrb[0].mxu0
      %v350 = vadd.f32 %v264, %v349
      %v351 = vpop.f32.mrb[0].mxu0
      %352 = vmatprep.mubr.f32.mxu0 0.0
      %v353 = vand.u32 %v189, 4294901760
      %354 = vmatmul.mubr.f32.gmra.mrb[0].mxu0 %v353
      %v355 = vpop.f32.mrb[0].mxu0
      %v356 = vadd.f32 %v274, %v355
      %v357 = vpop.f32.mrb[0].mxu0
      %358 = vdwg.mxu0
      %359 = vmatprep.subr.mxu0 0.0
      %v360 = vand.u32 %v176, 4294901760
      %v361 = vsub.f32 %v176, %v360
      %362 = vmatpush1.msra.mxu0 %v361
      %363 = vmatprep.subr.mxu0 0.0
      %364 = vmatpush1.msra.mxu0 0.0
      %365 = vmatprep.subr.mxu0 0.0
      %366 = vmatpush1.msra.mxu0 0.0
      %367 = vmatprep.subr.mxu0 0.0
      %368 = vmatpush1.msra.mxu0 0.0
      %369 = vmatprep.subr.mxu0 0.0
      %370 = vmatpush1.msra.mxu0 0.0
      %371 = vmatprep.subr.mxu0 0.0
      %372 = vmatpush1.msra.mxu0 0.0
      %373 = vmatprep.subr.mxu0 0.0
      %374 = vmatpush1.msra.mxu0 0.0
      %375 = vmatprep.subr.mxu0 0.0
      %376 = vmatpush1.msra.mxu0 0.0
      %377 = vmatprep.subr.mxu0 0.0
      %378 = vmatpush1.msra.mxu0 0.0
      %379 = vmatprep.subr.mxu0 0.0
      %380 = vmatpush1.msra.mxu0 0.0
      %381 = vmatprep.subr.mxu0 0.0
      %382 = vmatpush1.msra.mxu0 0.0
      %383 = vmatprep.subr.mxu0 0.0
      %384 = vmatpush1.msra.mxu0 0.0
      %385 = vmatprep.subr.mxu0 0.0
      %386 = vmatpush1.msra.mxu0 0.0
      %387 = vmatprep.subr.mxu0 0.0
      %388 = vmatpush1.msra.mxu0 0.0
      %389 = vmatprep.subr.mxu0 0.0
      %390 = vmatpush1.msra.mxu0 0.0
      %391 = vmatprep.subr.mxu0 0.0
      %392 = vmatpush1.msra.mxu0 0.0
      %393 = vmatprep.subr.mxu0 0.0
      %394 = vmatpush1.msra.mxu0 0.0
      %395 = vmatprep.subr.mxu0 0.0
      %396 = vmatpush1.msra.mxu0 0.0
      %397 = vmatprep.subr.mxu0 0.0
      %398 = vmatpush1.msra.mxu0 0.0
      %399 = vmatprep.subr.mxu0 0.0
      %400 = vmatpush1.msra.mxu0 0.0
      %401 = vmatprep.subr.mxu0 0.0
      %402 = vmatpush1.msra.mxu0 0.0
      %403 = vmatprep.subr.mxu0 0.0
      %404 = vmatpush1.msra.mxu0 0.0
      %405 = vmatprep.subr.mxu0 0.0
      %406 = vmatpush1.msra.mxu0 0.0
      %407 = vmatprep.subr.mxu0 0.0
      %408 = vmatpush1.msra.mxu0 0.0
      %409 = vmatprep.subr.mxu0 0.0
      %410 = vmatpush1.msra.mxu0 0.0
      %411 = vmatprep.subr.mxu0 0.0
      %412 = vmatpush1.msra.mxu0 0.0
      %413 = vmatprep.subr.mxu0 0.0
      %414 = vmatpush1.msra.mxu0 0.0
      %415 = vmatprep.subr.mxu0 0.0
      %416 = vmatpush1.msra.mxu0 0.0
      %417 = vmatprep.subr.mxu0 0.0
      %418 = vmatpush1.msra.mxu0 0.0
      %419 = vmatprep.subr.mxu0 0.0
      %420 = vmatpush1.msra.mxu0 0.0
      %421 = vmatprep.subr.mxu0 0.0
      %422 = vmatpush1.msra.mxu0 0.0
      %423 = vmatprep.subr.mxu0 0.0
      %424 = vmatpush1.msra.mxu0 0.0
      %425 = vmatprep.mubr.f32.mxu0 0.0
      %v426 = vand.u32 %v186, 4294901760
      %v427 = vsub.f32 %v186, %v426
      %428 = vmatmul.mubr.f32.gmra.mrb[0].mxu0 %v427
      %v429 = vpop.f32.mrb[0].mxu0
      %v430 = vadd.f32 %v350, %v429
      %v431 = vpop.f32.mrb[0].mxu0
      %432 = vmatprep.mubr.f32.mxu0 0.0
      %v433 = vand.u32 %v189, 4294901760
      %v434 = vsub.f32 %v189, %v433
      %435 = vmatmul.mubr.f32.gmra.mrb[0].mxu0 %v434
      %v436 = vpop.f32.mrb[0].mxu0
      %v437 = vadd.f32 %v356, %v436
      %v438 = vpop.f32.mrb[0].mxu0
      %439 = vdwg.mxu0
      %440 = vmatprep.subr.mxu0 0.0
      %v441 = vand.u32 %v176, 4294901760
      %442 = vmatpush1.msra.mxu0 %v441
      %443 = vmatprep.subr.mxu0 0.0
      %444 = vmatpush1.msra.mxu0 0.0
      %445 = vmatprep.subr.mxu0 0.0
      %446 = vmatpush1.msra.mxu0 0.0
      %447 = vmatprep.subr.mxu0 0.0
      %448 = vmatpush1.msra.mxu0 0.0
      %449 = vmatprep.subr.mxu0 0.0
      %450 = vmatpush1.msra.mxu0 0.0
      %451 = vmatprep.subr.mxu0 0.0
      %452 = vmatpush1.msra.mxu0 0.0
      %453 = vmatprep.subr.mxu0 0.0
      %454 = vmatpush1.msra.mxu0 0.0
      %455 = vmatprep.subr.mxu0 0.0
      %456 = vmatpush1.msra.mxu0 0.0
      %457 = vmatprep.subr.mxu0 0.0
      %458 = vmatpush1.msra.mxu0 0.0
      %459 = vmatprep.subr.mxu0 0.0
      %460 = vmatpush1.msra.mxu0 0.0
      %461 = vmatprep.subr.mxu0 0.0
      %462 = vmatpush1.msra.mxu0 0.0
      %463 = vmatprep.subr.mxu0 0.0
      %464 = vmatpush1.msra.mxu0 0.0
      %465 = vmatprep.subr.mxu0 0.0
      %466 = vmatpush1.msra.mxu0 0.0
      %467 = vmatprep.subr.mxu0 0.0
      %468 = vmatpush1.msra.mxu0 0.0
      %469 = vmatprep.subr.mxu0 0.0
      %470 = vmatpush1.msra.mxu0 0.0
      %471 = vmatprep.subr.mxu0 0.0
      %472 = vmatpush1.msra.mxu0 0.0
      %473 = vmatprep.subr.mxu0 0.0
      %474 = vmatpush1.msra.mxu0 0.0
      %475 = vmatprep.subr.mxu0 0.0
      %476 = vmatpush1.msra.mxu0 0.0
      %477 = vmatprep.subr.mxu0 0.0
      %478 = vmatpush1.msra.mxu0 0.0
      %479 = vmatprep.subr.mxu0 0.0
      %480 = vmatpush1.msra.mxu0 0.0
      %481 = vmatprep.subr.mxu0 0.0
      %482 = vmatpush1.msra.mxu0 0.0
      %483 = vmatprep.subr.mxu0 0.0
      %484 = vmatpush1.msra.mxu0 0.0
      %485 = vmatprep.subr.mxu0 0.0
      %486 = vmatpush1.msra.mxu0 0.0
      %487 = vmatprep.subr.mxu0 0.0
      %488 = vmatpush1.msra.mxu0 0.0
      %489 = vmatprep.subr.mxu0 0.0
      %490 = vmatpush1.msra.mxu0 0.0
      %491 = vmatprep.subr.mxu0 0.0
      %492 = vmatpush1.msra.mxu0 0.0
      %493 = vmatprep.subr.mxu0 0.0
      %494 = vmatpush1.msra.mxu0 0.0
      %495 = vmatprep.subr.mxu0 0.0
      %496 = vmatpush1.msra.mxu0 0.0
      %497 = vmatprep.subr.mxu0 0.0
      %498 = vmatpush1.msra.mxu0 0.0
      %499 = vmatprep.subr.mxu0 0.0
      %500 = vmatpush1.msra.mxu0 0.0
      %501 = vmatprep.subr.mxu0 0.0
      %502 = vmatpush1.msra.mxu0 0.0
      %503 = vmatprep.subr.mxu0 0.0
      %504 = vmatpush1.msra.mxu0 0.0
      %505 = vmatprep.mubr.f32.mxu0 0.0
      %v506 = vand.u32 %v186, 4294901760
      %v507 = vsub.f32 %v186, %v506
      %v508 = vand.u32 %v507, 4294901760
      %509 = vmatmul.mubr.f32.gmra.mrb[0].mxu0 %v508
      %v510 = vpop.f32.mrb[0].mxu0
      %v511 = vadd.f32 %v430, %v510
      %v512 = vpop.f32.mrb[0].mxu0
      %513 = vmatprep.mubr.f32.mxu0 0.0
      %v514 = vand.u32 %v189, 4294901760
      %v515 = vsub.f32 %v189, %v514
      %v516 = vand.u32 %v515, 4294901760
      %517 = vmatmul.mubr.f32.gmra.mrb[0].mxu0 %v516
      %v518 = vpop.f32.mrb[0].mxu0
      %v519 = vadd.f32 %v437, %v518
      %v520 = vpop.f32.mrb[0].mxu0
      %521 = vdwg.mxu0
      %522 = vmatprep.subr.mxu0 0.0
      %v523 = vand.u32 %v176, 4294901760
      %v524 = vsub.f32 %v176, %v523
      %v525 = vand.u32 %v524, 4294901760
      %526 = vmatpush1.msra.mxu0 %v525
      %527 = vmatprep.subr.mxu0 0.0
      %528 = vmatpush1.msra.mxu0 0.0
      %529 = vmatprep.subr.mxu0 0.0
      %530 = vmatpush1.msra.mxu0 0.0
      %531 = vmatprep.subr.mxu0 0.0
      %532 = vmatpush1.msra.mxu0 0.0
      %533 = vmatprep.subr.mxu0 0.0
      %534 = vmatpush1.msra.mxu0 0.0
      %535 = vmatprep.subr.mxu0 0.0
      %536 = vmatpush1.msra.mxu0 0.0
      %537 = vmatprep.subr.mxu0 0.0
      %538 = vmatpush1.msra.mxu0 0.0
      %539 = vmatprep.subr.mxu0 0.0
      %540 = vmatpush1.msra.mxu0 0.0
      %541 = vmatprep.subr.mxu0 0.0
      %542 = vmatpush1.msra.mxu0 0.0
      %543 = vmatprep.subr.mxu0 0.0
      %544 = vmatpush1.msra.mxu0 0.0
      %545 = vmatprep.subr.mxu0 0.0
      %546 = vmatpush1.msra.mxu0 0.0
      %547 = vmatprep.subr.mxu0 0.0
      %548 = vmatpush1.msra.mxu0 0.0
      %549 = vmatprep.subr.mxu0 0.0
      %550 = vmatpush1.msra.mxu0 0.0
      %551 = vmatprep.subr.mxu0 0.0
      %552 = vmatpush1.msra.mxu0 0.0
      %553 = vmatprep.subr.mxu0 0.0
      %554 = vmatpush1.msra.mxu0 0.0
      %555 = vmatprep.subr.mxu0 0.0
      %556 = vmatpush1.msra.mxu0 0.0
      %557 = vmatprep.subr.mxu0 0.0
      %558 = vmatpush1.msra.mxu0 0.0
      %559 = vmatprep.subr.mxu0 0.0
      %560 = vmatpush1.msra.mxu0 0.0
      %561 = vmatprep.subr.mxu0 0.0
      %562 = vmatpush1.msra.mxu0 0.0
      %563 = vmatprep.subr.mxu0 0.0
      %564 = vmatpush1.msra.mxu0 0.0
      %565 = vmatprep.subr.mxu0 0.0
      %566 = vmatpush1.msra.mxu0 0.0
      %567 = vmatprep.subr.mxu0 0.0
      %568 = vmatpush1.msra.mxu0 0.0
      %569 = vmatprep.subr.mxu0 0.0
      %570 = vmatpush1.msra.mxu0 0.0
      %571 = vmatprep.subr.mxu0 0.0
      %572 = vmatpush1.msra.mxu0 0.0
      %573 = vmatprep.subr.mxu0 0.0
      %574 = vmatpush1.msra.mxu0 0.0
      %575 = vmatprep.subr.mxu0 0.0
      %576 = vmatpush1.msra.mxu0 0.0
      %577 = vmatprep.subr.mxu0 0.0
      %578 = vmatpush1.msra.mxu0 0.0
      %579 = vmatprep.subr.mxu0 0.0
      %580 = vmatpush1.msra.mxu0 0.0
      %581 = vmatprep.subr.mxu0 0.0
      %582 = vmatpush1.msra.mxu0 0.0
      %583 = vmatprep.subr.mxu0 0.0
      %584 = vmatpush1.msra.mxu0 0.0
      %585 = vmatprep.subr.mxu0 0.0
      %586 = vmatpush1.msra.mxu0 0.0
      %587 = vmatprep.subr.mxu0 0.0
      %588 = vmatpush1.msra.mxu0 0.0
      %589 = vmatprep.mubr.f32.mxu0 0.0
      %v590 = vand.u32 %v186, 4294901760
      %591 = vmatmul.mubr.f32.gmra.mrb[0].mxu0 %v590
      %v592 = vpop.f32.mrb[0].mxu0
      %v593 = vadd.f32 %v511, %v592
      %v594 = vpop.f32.mrb[0].mxu0
      %595 = vmatprep.mubr.f32.mxu0 0.0
      %v596 = vand.u32 %v189, 4294901760
      %597 = vmatmul.mubr.f32.gmra.mrb[0].mxu0 %v596
      %v598 = vpop.f32.mrb[0].mxu0
      %v599 = vadd.f32 %v519, %v598
      %v600 = vpop.f32.mrb[0].mxu0
      %601 = vdwg.mxu0
      %602 = vmatprep.subr.mxu0 0.0
      %v603 = vand.u32 %v176, 4294901760
      %604 = vmatpush1.msra.mxu0 %v603
      %605 = vmatprep.subr.mxu0 0.0
      %606 = vmatpush1.msra.mxu0 0.0
      %607 = vmatprep.subr.mxu0 0.0
      %608 = vmatpush1.msra.mxu0 0.0
      %609 = vmatprep.subr.mxu0 0.0
      %610 = vmatpush1.msra.mxu0 0.0
      %611 = vmatprep.subr.mxu0 0.0
      %612 = vmatpush1.msra.mxu0 0.0
      %613 = vmatprep.subr.mxu0 0.0
      %614 = vmatpush1.msra.mxu0 0.0
      %615 = vmatprep.subr.mxu0 0.0
      %616 = vmatpush1.msra.mxu0 0.0
      %617 = vmatprep.subr.mxu0 0.0
      %618 = vmatpush1.msra.mxu0 0.0
      %619 = vmatprep.subr.mxu0 0.0
      %620 = vmatpush1.msra.mxu0 0.0
      %621 = vmatprep.subr.mxu0 0.0
      %622 = vmatpush1.msra.mxu0 0.0
      %623 = vmatprep.subr.mxu0 0.0
      %624 = vmatpush1.msra.mxu0 0.0
      %625 = vmatprep.subr.mxu0 0.0
      %626 = vmatpush1.msra.mxu0 0.0
      %627 = vmatprep.subr.mxu0 0.0
      %628 = vmatpush1.msra.mxu0 0.0
      %629 = vmatprep.subr.mxu0 0.0
      %630 = vmatpush1.msra.mxu0 0.0
      %631 = vmatprep.subr.mxu0 0.0
      %632 = vmatpush1.msra.mxu0 0.0
      %633 = vmatprep.subr.mxu0 0.0
      %634 = vmatpush1.msra.mxu0 0.0
      %635 = vmatprep.subr.mxu0 0.0
      %636 = vmatpush1.msra.mxu0 0.0
      %637 = vmatprep.subr.mxu0 0.0
      %638 = vmatpush1.msra.mxu0 0.0
      %639 = vmatprep.subr.mxu0 0.0
      %640 = vmatpush1.msra.mxu0 0.0
      %641 = vmatprep.subr.mxu0 0.0
      %642 = vmatpush1.msra.mxu0 0.0
      %643 = vmatprep.subr.mxu0 0.0
      %644 = vmatpush1.msra.mxu0 0.0
      %645 = vmatprep.subr.mxu0 0.0
      %646 = vmatpush1.msra.mxu0 0.0
      %647 = vmatprep.subr.mxu0 0.0
      %648 = vmatpush1.msra.mxu0 0.0
      %649 = vmatprep.subr.mxu0 0.0
      %650 = vmatpush1.msra.mxu0 0.0
      %651 = vmatprep.subr.mxu0 0.0
      %652 = vmatpush1.msra.mxu0 0.0
      %653 = vmatprep.subr.mxu0 0.0
      %654 = vmatpush1.msra.mxu0 0.0
      %655 = vmatprep.subr.mxu0 0.0
      %656 = vmatpush1.msra.mxu0 0.0
      %657 = vmatprep.subr.mxu0 0.0
      %658 = vmatpush1.msra.mxu0 0.0
      %659 = vmatprep.subr.mxu0 0.0
      %660 = vmatpush1.msra.mxu0 0.0
      %661 = vmatprep.subr.mxu0 0.0
      %662 = vmatpush1.msra.mxu0 0.0
      %663 = vmatprep.subr.mxu0 0.0
      %664 = vmatpush1.msra.mxu0 0.0
      %665 = vmatprep.subr.mxu0 0.0
      %666 = vmatpush1.msra.mxu0 0.0
      %667 = vmatprep.mubr.f32.mxu0 0.0
      %v668 = vand.u32 %v186, 4294901760
      %669 = vmatmul.mubr.f32.gmra.mrb[0].mxu0 %v668
      %v670 = vpop.f32.mrb[0].mxu0
      %v671 = vadd.f32 %v593, %v670
      %v672 = vpop.f32.mrb[0].mxu0
      %673 = vmatprep.mubr.f32.mxu0 0.0
      %v674 = vand.u32 %v189, 4294901760
      %675 = vmatmul.mubr.f32.gmra.mrb[0].mxu0 %v674
      %v676 = vpop.f32.mrb[0].mxu0
      %v677 = vadd.f32 %v599, %v676
      %v678 = vpop.f32.mrb[0].mxu0
      %679 = vdwg.mxu0
      %v680 = vadd.f32 %v671, %v174
      %v681 = vadd.f32 %v677, %v175
      %682 = vst.msk [vmem:[%s172] sm:$0xff] %vm184, %v680
      %683 = vst.msk [vmem:[%s172 + $0x8] sm:$0xff] %vm184, %v681
      %s684 = smul.u32 2, %s14
      %p685 = scmp.lt.s32.totalorder %s684, 3
      %s686 = scalar_select %p685, %s684, 3
      %s687 = smul.addr %s686, 8
      %s688 = scalar_lea.vmem %s3, %s687
      // Predicated region
      $region33: #{tpu_custom_call.1} parent=31 // pred_check
        %p689 = pneg %p100
      $region34: #{tpu_custom_call.1} parent=31 // pred_check_branch
        %691 = sbr.rel (%p689) target = $region36
      $region35: #{tpu_custom_call.1} parent=31 // pred_region
        %s692 = smul.u32 2, %s14
      $region36: #{tpu_custom_call.1} parent=31 // pred_fallthru
        _
    $region32: #{tpu_custom_call.1} parent=5 // pred_fallthru
      _
    %p693 = scmp.le.s32.totalorder 2, %s9
    // Predicated region
    $region37: #{tpu_custom_call.1} parent=5 // pred_check
      %p694 = pneg %p693
    $region38: #{tpu_custom_call.1} parent=5 // pred_check_branch
      %696 = sbr.rel (%p694) target = $region40
    $region39: #{tpu_custom_call.1} parent=5 // pred_region
      %s697 = ssub.s32 %s9, 2
      // Predicated region
      $region41: #{tpu_custom_call.1} parent=39 // pred_check
        %p698 = pneg %p106
      $region42: #{tpu_custom_call.1} parent=39 // pred_check_branch
        %700 = sbr.rel (%p698) target = $region44
      $region43: #{tpu_custom_call.1} parent=39 // pred_region
        %s701 = smul.u32 2, %s15
        %p702 = scmp.lt.s32.totalorder %s701, 3
        %s703 = scalar_select %p702, %s701, 3
        %s704 = smul.addr %s703, 8
        %s705 = scalar_lea.vmem %s3, %s704
      $region44: #{tpu_custom_call.1} parent=39 // pred_fallthru
        _
    $region40: #{tpu_custom_call.1} parent=5 // pred_fallthru
      _
  $region6: #{tpu_custom_call.1} parent=0 // loop_footer
    %s13 = sadd.s32 1, %s9
  $region7: #{tpu_custom_call.1} parent=0 // loop_footer_branch
    %8 = sbr.rel target = $region3
  $region8: #{tpu_custom_call.1} parent=0 // loop_exit
    _

</llo_original>
